<compile_context>
chip_gen: v7x
topology: tpu7x:2x2x1
jax: 0.10.0
libtpu: 0.0.40
codegen_flags: <defaults>
</compile_context>

<pallas_src>
import jax
import jax.numpy as jnp
import numpy as np
from jax.experimental import pallas as pl
from jax.experimental.pallas import tpu as pltpu

ALPHA = 0.1
T = 10.0
IGNORE_LABEL = 6


def _make_kernel(alpha: float, temp: float, n_total: int, tile_n: int):
    kd_scale = np.float32(alpha * temp * temp)
    ce_scale = np.float32(1.0 - alpha)
    inv_t = np.float32(1.0 / temp)

    def kernel(x_ref, t_ref, lab_ref, out_ref):
        # Classes on sublanes, samples on lanes (lane-dense for any C).
        x = x_ref[...].astype(jnp.float32)      # (C, TN) student logits
        t = t_ref[...].astype(jnp.float32)      # (C, TN) teacher logits
        lab = lab_ref[...]                      # (1, TN) int32 labels
        c, tn = x.shape

        # ---- shared student stats (raw logits) ----
        x_max = jnp.max(x, axis=0, keepdims=True)                      # (1, TN)
        ex = jnp.exp(x - x_max)                                        # (C, TN)
        x_lse = jnp.log(jnp.sum(ex, axis=0, keepdims=True)) + x_max    # (1, TN)

        # ---- KD term: sum_c q * (log q - log p), p = softmax(x/T), q = softmax(t/T)
        # log q - log p = (ts - xs) + (xs_max - ts_max) + log(xe_sum / te_sum)
        # and sum_c q == 1, so the constant factors out of the weighted sum.
        xs = x * inv_t
        ts = t * inv_t
        xs_max = x_max * inv_t                  # reuse raw max: max(x/T) == max(x)/T
        ts_max = jnp.max(ts, axis=0, keepdims=True)
        xe_sum = jnp.sum(jnp.exp(xs - xs_max), axis=0, keepdims=True)  # (1, TN)
        te = jnp.exp(ts - ts_max)                                       # (C, TN)
        te_sum = jnp.sum(te, axis=0, keepdims=True)                     # (1, TN)
        weighted = jnp.sum(te * ((ts - xs) + (xs_max - ts_max)),
                           axis=0, keepdims=True)                       # (1, TN)

        # EUP approx reciprocal + one Newton step (keeps full f32 accuracy;
        # only touches the tiny (1, TN) row).
        r = pl.reciprocal(te_sum, approx=True)
        r = r * (np.float32(2.0) - te_sum * r)
        kd_sum = weighted * r + jnp.log(xe_sum * r)                     # single log

        # ---- CE term on raw (untempered) logits ----
        row = jax.lax.broadcasted_iota(jnp.int32, (c, tn), 0)
        x_at_label = jnp.sum(jnp.where(row == lab, x, 0.0),
                             axis=0, keepdims=True)                     # (1, TN)
        ce = x_lse - x_at_label

        # ---- combine + mask the (possibly garbage) out-of-range tail columns ----
        per = kd_sum * kd_scale + jnp.where(lab != IGNORE_LABEL, ce, 0.0) * ce_scale
        col = (pl.program_id(0) * tile_n
               + jax.lax.broadcasted_iota(jnp.int32, (1, tn), 1))
        out_ref[...] = jnp.where(col < n_total, per, 0.0)

    return kernel


def _auto_tile(c: int, n: int, tile_n):
    """Pick tile width + VMEM limit from an honest per-step VMEM model."""
    try:
        vmem_cap = int(pltpu.get_tpu_info().vmem_capacity_bytes)
    except Exception:
        vmem_cap = 64 * 1024 * 1024  # conservative (v7x physical per-TC VMEM)
    # Explicit scoped-VMEM limit: 3/4 of physical, capped at 64 MiB
    # (v5e/v6e: 64 MiB of 128 MiB; v7x: 48 MiB of 64 MiB).
    vmem_limit = min((vmem_cap * 3) // 4, 64 * 1024 * 1024)

    # Per-step VMEM model: double-buffered f32 inputs (2 * 2 * 4 * C) plus
    # ~5-7 whole-tile f32 temporaries (xs/ts/te/iota/exp/where) plus output
    # ~= 40 * C bytes per lane.  Use half the limit so Mosaic keeps headroom.
    bytes_per_lane = 40 * max(c, 1)
    tile_from_vmem = max(128, ((vmem_limit // 2) // bytes_per_lane) // 128 * 128)

    # Keep >= 2 grid steps whenever N allows it (v7x megacore sharding) and cap
    # the absolute tile so per-step DMA stays a few MiB.
    two_step_cap = max(128, ((pl.cdiv(n, 2) + 127) // 128) * 128)
    auto = min(tile_from_vmem, 65536, two_step_cap)

    if tile_n is None:
        tile_n = auto
    tile_n = max(128, (min(int(tile_n), tile_from_vmem) // 128) * 128)
    return tile_n, vmem_limit


def soft_pseudo_label_loss_cn(outputs_cn, labels, teacher_cn,
                              alpha=ALPHA, temp=T, tile_n=None):
    """Class-major entry point: logits are (C, N).  Zero wrapper relayout."""
    c, n = outputs_cn.shape
    tile_n, vmem_limit = _auto_tile(c, n, tile_n)

    lab = labels.reshape(1, n).astype(jnp.int32)
    kernel = _make_kernel(alpha, temp, n, tile_n)

    per_sample = pl.pallas_call(
        kernel,
        out_shape=jax.ShapeDtypeStruct((1, n), jnp.float32),
        grid_spec=pltpu.PrefetchScalarGridSpec(
            num_scalar_prefetch=0,
            grid=(pl.cdiv(n, tile_n),),
            in_specs=[
                pl.BlockSpec((c, tile_n), lambda i: (0, i)),
                pl.BlockSpec((c, tile_n), lambda i: (0, i)),
                pl.BlockSpec((1, tile_n), lambda i: (0, i)),
            ],
            out_specs=pl.BlockSpec((1, tile_n), lambda i: (0, i)),
        ),
        compiler_params=pltpu.CompilerParams(
            dimension_semantics=("parallel",),
            vmem_limit_bytes=int(vmem_limit),
        ),
    )(outputs_cn, teacher_cn, lab)

    # Tiny epilogue: mean over ALL rows, as in the PyTorch module.
    return jnp.sum(per_sample) / jnp.float32(n)


def soft_pseudo_label_loss(outputs, labels, teacher_outputs,
                           alpha=ALPHA, temp=T, tile_n=None):
    """Module-compatible entry point: logits are (N, C) like the nn.Module.

    The only relayout is a single (N, C) -> (C, N) transpose per logits tensor
    (no zero-pad pass, no upcast: the caller's dtype flows through unchanged).
    Callers that can supply class-major logits should use
    soft_pseudo_label_loss_cn directly and skip even this transpose.
    """
    return soft_pseudo_label_loss_cn(outputs.T, labels, teacher_outputs.T,
                                     alpha=alpha, temp=temp, tile_n=tile_n)


def reference_loss(outputs, labels, teacher_outputs, alpha=ALPHA, temp=T):
    log_p = jax.nn.log_softmax(outputs / temp, axis=1)
    q = jax.nn.softmax(teacher_outputs / temp, axis=1)
    kd = q * (jnp.log(q) - log_p)
    kd_sum = kd.sum(axis=1) * (alpha * temp * temp)
    log_sm = jax.nn.log_softmax(outputs, axis=1)
    ce = -jnp.take_along_axis(log_sm, labels[:, None], axis=1)[:, 0] * (1.0 - alpha)
    valid = labels != IGNORE_LABEL
    total = kd_sum + jnp.where(valid, ce, 0.0)
    return total.mean()


if __name__ == "__main__":
    key = jax.random.PRNGKey(0)
    k1, k2, k3 = jax.random.split(key, 3)

    N, C = 300, 8  # small synthetic shapes: 300 samples, 8 classes
    outputs = jax.random.normal(k1, (N, C), dtype=jnp.float32)
    teacher_outputs = jax.random.normal(k2, (N, C), dtype=jnp.float32)
    labels = jax.random.randint(k3, (N,), 0, C, dtype=jnp.int32)
    labels = labels.at[0].set(IGNORE_LABEL)  # exercise the ignore path

    ref = jax.block_until_ready(reference_loss(outputs, labels, teacher_outputs))

    # Small tile -> multiple grid steps + a partial (masked) tail block.
    loss_small = jax.block_until_ready(
        soft_pseudo_label_loss(outputs, labels, teacher_outputs, tile_n=128))
    np.testing.assert_allclose(np.asarray(loss_small), np.asarray(ref),
                               rtol=1e-5, atol=1e-5)

    # Auto tile (production path: large lane-dense tiles, >=2 grid steps).
    loss_auto = jax.block_until_ready(
        soft_pseudo_label_loss(outputs, labels, teacher_outputs))
    np.testing.assert_allclose(np.asarray(loss_auto), np.asarray(ref),
                               rtol=1e-5, atol=1e-5)

    # Dtype pass-through: bf16 logits are read directly (half the HBM traffic);
    # math inside the kernel stays f32, so only the input quantization differs.
    loss_bf16 = jax.block_until_ready(
        soft_pseudo_label_loss(outputs.astype(jnp.bfloat16), labels,
                               teacher_outputs.astype(jnp.bfloat16)))
    np.testing.assert_allclose(np.asarray(loss_bf16), np.asarray(ref),
                               rtol=5e-2, atol=5e-2)

    print("KERNEL_OK")
</pallas_src>

<mosaic_0001>
module attributes {stable_mosaic.version = 11 : i64} {
  func.func @kernel(%arg0: i32, %arg1: memref<8x128xf32, #tpu.memory_space<vmem>>, %arg2: memref<8x128xf32, #tpu.memory_space<vmem>>, %arg3: memref<1x128xi32, #tpu.memory_space<vmem>>, %arg4: memref<1x128xf32, #tpu.memory_space<vmem>>) attributes {dimension_semantics = [#tpu.dimension_semantics<parallel>], iteration_bounds = array<i64: 3>, scalar_prefetch = 0 : i64, scratch_operands = 0 : i64, tpu.core_type = #tpu.core_type<tc>, window_params = [{transform_indices = @transform_0, window_bounds = array<i64: 8, 128>}, {transform_indices = @transform_1, window_bounds = array<i64: 8, 128>}, {transform_indices = @transform_2, window_bounds = array<i64: 1, 128>}, {transform_indices = @transform_3, window_bounds = array<i64: 1, 128>}]} {
    %c0 = arith.constant 0 : index
    %c0_0 = arith.constant 0 : index
    %0 = vector.load %arg1[%c0, %c0_0] : memref<8x128xf32, #tpu.memory_space<vmem>>, vector<8x128xf32>
    %c0_1 = arith.constant 0 : index
    %c0_2 = arith.constant 0 : index
    %1 = vector.load %arg2[%c0_1, %c0_2] : memref<8x128xf32, #tpu.memory_space<vmem>>, vector<8x128xf32>
    %c0_3 = arith.constant 0 : index
    %c0_4 = arith.constant 0 : index
    %2 = vector.load %arg3[%c0_3, %c0_4] : memref<1x128xi32, #tpu.memory_space<vmem>>, vector<1x128xi32>
    %cst = arith.constant dense<0xFF800000> : vector<128xf32>
    %3 = vector.multi_reduction <maximumf>, %0, %cst [0] : vector<8x128xf32> to vector<128xf32>
    %4 = vector.shape_cast %3 : vector<128xf32> to vector<1x128xf32>
    %5 = vector.broadcast %4 : vector<1x128xf32> to vector<8x128xf32>
    %6 = arith.subf %0, %5 : vector<8x128xf32>
    %7 = math.exp %6 : vector<8x128xf32>
    %cst_5 = arith.constant dense<0.000000e+00> : vector<128xf32>
    %8 = vector.multi_reduction <add>, %7, %cst_5 [0] : vector<8x128xf32> to vector<128xf32>
    %9 = vector.shape_cast %8 : vector<128xf32> to vector<1x128xf32>
    %10 = math.log %9 : vector<1x128xf32>
    %11 = arith.addf %10, %4 : vector<1x128xf32>
    %cst_6 = arith.constant 1.000000e-01 : f32
    %12 = vector.broadcast %cst_6 : f32 to vector<8x128xf32>
    %13 = arith.mulf %0, %12 : vector<8x128xf32>
    %cst_7 = arith.constant 1.000000e-01 : f32
    %14 = vector.broadcast %cst_7 : f32 to vector<8x128xf32>
    %15 = arith.mulf %1, %14 : vector<8x128xf32>
    %cst_8 = arith.constant 1.000000e-01 : f32
    %16 = vector.broadcast %cst_8 : f32 to vector<1x128xf32>
    %17 = arith.mulf %4, %16 : vector<1x128xf32>
    %cst_9 = arith.constant dense<0xFF800000> : vector<128xf32>
    %18 = vector.multi_reduction <maximumf>, %15, %cst_9 [0] : vector<8x128xf32> to vector<128xf32>
    %19 = vector.shape_cast %18 : vector<128xf32> to vector<1x128xf32>
    %20 = vector.broadcast %17 : vector<1x128xf32> to vector<8x128xf32>
    %21 = arith.subf %13, %20 : vector<8x128xf32>
    %22 = math.exp %21 : vector<8x128xf32>
    %cst_10 = arith.constant dense<0.000000e+00> : vector<128xf32>
    %23 = vector.multi_reduction <add>, %22, %cst_10 [0] : vector<8x128xf32> to vector<128xf32>
    %24 = vector.shape_cast %23 : vector<128xf32> to vector<1x128xf32>
    %25 = vector.broadcast %19 : vector<1x128xf32> to vector<8x128xf32>
    %26 = arith.subf %15, %25 : vector<8x128xf32>
    %27 = math.exp %26 : vector<8x128xf32>
    %cst_11 = arith.constant dense<0.000000e+00> : vector<128xf32>
    %28 = vector.multi_reduction <add>, %27, %cst_11 [0] : vector<8x128xf32> to vector<128xf32>
    %29 = vector.shape_cast %28 : vector<128xf32> to vector<1x128xf32>
    %30 = arith.subf %15, %13 : vector<8x128xf32>
    %31 = arith.subf %17, %19 : vector<1x128xf32>
    %32 = vector.broadcast %31 : vector<1x128xf32> to vector<8x128xf32>
    %33 = arith.addf %30, %32 : vector<8x128xf32>
    %34 = arith.mulf %27, %33 : vector<8x128xf32>
    %cst_12 = arith.constant dense<0.000000e+00> : vector<128xf32>
    %35 = vector.multi_reduction <add>, %34, %cst_12 [0] : vector<8x128xf32> to vector<128xf32>
    %36 = vector.shape_cast %35 : vector<128xf32> to vector<1x128xf32>
    %37 = tpu.reciprocal %29 {approx = true} : vector<1x128xf32> -> vector<1x128xf32>
    %38 = arith.mulf %29, %37 : vector<1x128xf32>
    %cst_13 = arith.constant 2.000000e+00 : f32
    %39 = vector.broadcast %cst_13 : f32 to vector<1x128xf32>
    %40 = arith.subf %39, %38 : vector<1x128xf32>
    %41 = arith.mulf %37, %40 : vector<1x128xf32>
    %42 = arith.mulf %36, %41 : vector<1x128xf32>
    %43 = arith.mulf %24, %41 : vector<1x128xf32>
    %44 = math.log %43 : vector<1x128xf32>
    %45 = arith.addf %42, %44 : vector<1x128xf32>
    %46 = tpu.iota {dimensions = array<i32: 0>} : vector<8x128xi32>
    %47 = vector.broadcast %2 : vector<1x128xi32> to vector<8x128xi32>
    %48 = arith.cmpi eq, %46, %47 : vector<8x128xi32>
    %cst_14 = arith.constant 0.000000e+00 : f32
    %49 = vector.broadcast %cst_14 : f32 to vector<8x128xf32>
    %50 = arith.select %48, %0, %49 : vector<8x128xi1>, vector<8x128xf32>
    %cst_15 = arith.constant dense<0.000000e+00> : vector<128xf32>
    %51 = vector.multi_reduction <add>, %50, %cst_15 [0] : vector<8x128xf32> to vector<128xf32>
    %52 = vector.shape_cast %51 : vector<128xf32> to vector<1x128xf32>
    %53 = arith.subf %11, %52 : vector<1x128xf32>
    %cst_16 = arith.constant 1.000000e+01 : f32
    %54 = vector.broadcast %cst_16 : f32 to vector<1x128xf32>
    %55 = arith.mulf %45, %54 : vector<1x128xf32>
    %c6_i32 = arith.constant 6 : i32
    %56 = vector.broadcast %c6_i32 : i32 to vector<1x128xi32>
    %57 = arith.cmpi ne, %2, %56 : vector<1x128xi32>
    %cst_17 = arith.constant 0.000000e+00 : f32
    %58 = vector.broadcast %cst_17 : f32 to vector<1x128xf32>
    %59 = arith.select %57, %53, %58 : vector<1x128xi1>, vector<1x128xf32>
    %cst_18 = arith.constant 0.899999976 : f32
    %60 = vector.broadcast %cst_18 : f32 to vector<1x128xf32>
    %61 = arith.mulf %59, %60 : vector<1x128xf32>
    %62 = arith.addf %55, %61 : vector<1x128xf32>
    %c128_i32 = arith.constant 128 : i32
    %63 = arith.muli %arg0, %c128_i32 : i32
    %64 = tpu.iota {dimensions = array<i32: 1>} : vector<1x128xi32>
    %65 = vector.broadcast %63 : i32 to vector<1x128xi32>
    %66 = arith.addi %65, %64 : vector<1x128xi32>
    %c300_i32 = arith.constant 300 : i32
    %67 = vector.broadcast %c300_i32 : i32 to vector<1x128xi32>
    %68 = arith.cmpi slt, %66, %67 : vector<1x128xi32>
    %cst_19 = arith.constant 0.000000e+00 : f32
    %69 = vector.broadcast %cst_19 : f32 to vector<1x128xf32>
    %70 = arith.select %68, %62, %69 : vector<1x128xi1>, vector<1x128xf32>
    %c0_20 = arith.constant 0 : index
    %c0_21 = arith.constant 0 : index
    %71 = vector.load %arg4[%c0_20, %c0_21] : memref<1x128xf32, #tpu.memory_space<vmem>>, vector<1x128xf32>
    tpu.vector_store %arg4[%c0_20, %c0_21], %70 {strides = array<i32>} : memref<1x128xf32, #tpu.memory_space<vmem>>, vector<1x128xf32>,
    return
  }
  func.func @transform_0(%arg0: i32) -> (i32, i32) {
    %c0_i32 = arith.constant 0 : i32
    %c0_i32_0 = arith.constant 0 : i32
    return %c0_i32, %arg0 : i32, i32
  }
  func.func @transform_1(%arg0: i32) -> (i32, i32) {
    %c0_i32 = arith.constant 0 : i32
    %c0_i32_0 = arith.constant 0 : i32
    return %c0_i32, %arg0 : i32, i32
  }
  func.func @transform_2(%arg0: i32) -> (i32, i32) {
    %c0_i32 = arith.constant 0 : i32
    %c0_i32_0 = arith.constant 0 : i32
    return %c0_i32, %arg0 : i32, i32
  }
  func.func @transform_3(%arg0: i32) -> (i32, i32) {
    %c0_i32 = arith.constant 0 : i32
    %c0_i32_0 = arith.constant 0 : i32
    return %c0_i32, %arg0 : i32, i32
  }
}

</mosaic_0001>

<llo_original>
// kernel: tpu_custom_call.1
$region0: #{tpu_custom_call.1}
  #allocation0 [shape = 'u32[]', space=smem, size = 0x4, offset = 0x4, fixed_abs, tag = 'smem constant byte address 0x4 - core index']
  #allocation1 [shape = 'u32[144,128]{1,0:T(1,128)}', space=vmem, size = 0x12000, scoped, tag = 'internal scratch']
  %s0 = inlined_call_operand.hbm [shape: f32[8,300], index: 0, kind: input, shape index: {}]
  %s1 = inlined_call_operand.hbm [shape: f32[8,300], index: 1, kind: input, shape index: {}]
  %s2 = inlined_call_operand.vmem [shape: s32[1,300], index: 2, kind: input, shape index: {}]
  %s3 = inlined_call_operand.hbm [shape: f32[1,300], index: 3, kind: output, shape index: {}]
  %s4 = sld [smem:[#allocation0]]
  $region53: #{tpu_custom_call.1} parent=0
    _
  %s6 = ssub.s32 1, %s4
  %s7 = scalar_select 0, %s6, %s4
  $region1: #{tpu_custom_call.1} parent=0
    #allocation2 [shape = 'u8[8192]{0}', space=vmem, size = 0x2000, scoped, tag = 'input window, operand 0']
    #allocation3 [shape = 's32[2]{0}', space=sflag, size = 0x8, scoped, tag = 'scoped memory for tpu_custom_call.1']
    #allocation4 [shape = 's32[2]{0}', space=sflag, size = 0x8, scoped, tag = 'scoped memory for tpu_custom_call.1']
    #allocation5 [shape = 'u8[8192]{0}', space=vmem, size = 0x2000, scoped, tag = 'input window, operand 1']
    #allocation6 [shape = 's32[2]{0}', space=sflag, size = 0x8, scoped, tag = 'scoped memory for tpu_custom_call.1']
    #allocation7 [shape = 'u8[1024]{0}', space=vmem, size = 0x400, scoped, tag = 'output window, operand 0']
    %8 = vsyncpa [#allocation3], 0
    %s9 = scalar_lea.sflag [#allocation3], 1
    %10 = vsyncpa %s9, 0
    %11 = vsyncpa [#allocation6], 0
    %s12 = scalar_lea.sflag [#allocation6], 1
    %13 = vsyncpa %s12, 0
    %14 = vsyncpa [#allocation4], 0
    %s15 = scalar_lea.sflag [#allocation4], 1
    %16 = vsyncpa %s15, 0
    loop: start=0, step=1, limit=5
    $region2: #{tpu_custom_call.1} parent=1 // loop_pre_header
      _
    $region3: #{tpu_custom_call.1} parent=1 // loop_header
      %s18 = sphi 0, %s22
      %p19 = scmp.ge.s32.totalorder %s18, 5
      %s28 = sphi 0, %s30
      %s31 = sphi 0, %s28
      %s32 = sphi 0, %s31
      %s48 = sphi 0, %s32
      %s54 = sphi 0, %s56
      %s57 = sphi 0, %s54
      %s58 = sphi 0, %s57
      %s74 = sphi 0, %s58
      %s80 = sphi 0, %s82
      %s83 = sphi 0, %s80
      %s84 = sphi 0, %s83
      %s100 = sphi 0, %s84
      %s106 = sphi 0, %s108
      %s109 = sphi 0, %s106
      %s110 = sphi 0, %s109
      %s126 = sphi 0, %s110
    $region4: #{tpu_custom_call.1} parent=1 // loop_header_branch
      %21 = sbr.rel (%p19) target = $region8
    $region5: #{tpu_custom_call.1} parent=1 // loop_body
      %s23 = ssub.s32 %s18, 1
      %s24 = ssub.s32 %s18, 2
      %s25 = sadd.s32 %s18, 1
      %s26 = ssub.s32 %s18, %s25
      %p27 = scmp.eq.s32.totalorder %s26, 0
      %s29 = sadd.s32 %s28, 1
      %s30 = scalar_select %p27, %s28, %s29
      %p33 = pneg %p27
      %p34 = scmp.eq.s32.totalorder %s18, 2
      %p35 = por %p33, %p34
      %p36 = scmp.ne.s32.totalorder %s28, %s31
      %p37 = scmp.eq.s32.totalorder %s18, 0
      %p38 = por %p36, %p37
      %p39 = scmp.ne.s32.totalorder %s28, %s31
      %p40 = scmp.eq.s32.totalorder %s23, 2
      %p41 = por %p39, %p40
      %p42 = scmp.ne.s32.totalorder %s31, %s32
      %p43 = scmp.eq.s32.totalorder %s23, 0
      %p44 = por %p42, %p43
      %p45 = scmp.ne.s32.totalorder %s31, %s32
      %p46 = scmp.eq.s32.totalorder %s24, 2
      %p47 = por %p45, %p46
      %p49 = scmp.ne.s32.totalorder %s32, %s48
      %p50 = scmp.eq.s32.totalorder %s24, 0
      %p51 = por %p49, %p50
      %s52 = ssub.s32 %s18, %s25
      %p53 = scmp.eq.s32.totalorder %s52, 0
      %s55 = sadd.s32 %s54, 1
      %s56 = scalar_select %p53, %s54, %s55
      %p59 = pneg %p53
      %p60 = scmp.eq.s32.totalorder %s18, 2
      %p61 = por %p59, %p60
      %p62 = scmp.ne.s32.totalorder %s54, %s57
      %p63 = scmp.eq.s32.totalorder %s18, 0
      %p64 = por %p62, %p63
      %p65 = scmp.ne.s32.totalorder %s54, %s57
      %p66 = scmp.eq.s32.totalorder %s23, 2
      %p67 = por %p65, %p66
      %p68 = scmp.ne.s32.totalorder %s57, %s58
      %p69 = scmp.eq.s32.totalorder %s23, 0
      %p70 = por %p68, %p69
      %p71 = scmp.ne.s32.totalorder %s57, %s58
      %p72 = scmp.eq.s32.totalorder %s24, 2
      %p73 = por %p71, %p72
      %p75 = scmp.ne.s32.totalorder %s58, %s74
      %p76 = scmp.eq.s32.totalorder %s24, 0
      %p77 = por %p75, %p76
      %s78 = ssub.s32 %s18, %s25
      %p79 = scmp.eq.s32.totalorder %s78, 0
      %s81 = sadd.s32 %s80, 1
      %s82 = scalar_select %p79, %s80, %s81
      %p85 = pneg %p79
      %p86 = scmp.eq.s32.totalorder %s18, 2
      %p87 = por %p85, %p86
      %p88 = scmp.ne.s32.totalorder %s80, %s83
      %p89 = scmp.eq.s32.totalorder %s18, 0
      %p90 = por %p88, %p89
      %p91 = scmp.ne.s32.totalorder %s80, %s83
      %p92 = scmp.eq.s32.totalorder %s23, 2
      %p93 = por %p91, %p92
      %p94 = scmp.ne.s32.totalorder %s83, %s84
      %p95 = scmp.eq.s32.totalorder %s23, 0
      %p96 = por %p94, %p95
      %p97 = scmp.ne.s32.totalorder %s83, %s84
      %p98 = scmp.eq.s32.totalorder %s24, 2
      %p99 = por %p97, %p98
      %p101 = scmp.ne.s32.totalorder %s84, %s100
      %p102 = scmp.eq.s32.totalorder %s24, 0
      %p103 = por %p101, %p102
      %s104 = ssub.s32 %s18, %s25
      %p105 = scmp.eq.s32.totalorder %s104, 0
      %s107 = sadd.s32 %s106, 1
      %s108 = scalar_select %p105, %s106, %s107
      %p111 = pneg %p105
      %p112 = scmp.eq.s32.totalorder %s18, 2
      %p113 = por %p111, %p112
      %p114 = scmp.ne.s32.totalorder %s106, %s109
      %p115 = scmp.eq.s32.totalorder %s18, 0
      %p116 = por %p114, %p115
      %p117 = scmp.ne.s32.totalorder %s106, %s109
      %p118 = scmp.eq.s32.totalorder %s23, 2
      %p119 = por %p117, %p118
      %p120 = scmp.ne.s32.totalorder %s109, %s110
      %p121 = scmp.eq.s32.totalorder %s23, 0
      %p122 = por %p120, %p121
      %p123 = scmp.ne.s32.totalorder %s109, %s110
      %p124 = scmp.eq.s32.totalorder %s24, 2
      %p125 = por %p123, %p124
      %p127 = scmp.ne.s32.totalorder %s110, %s126
      %p128 = scmp.eq.s32.totalorder %s24, 0
      %p129 = por %p127, %p128
      %p130 = scmp.le.s32.totalorder 1, %s18
      %p131 = scmp.lt.s32.totalorder %s18, 4
      %p132 = pnand %p130, %p131
      %p133 = pneg %p132
      // Predicated region
      $region9: #{tpu_custom_call.1} parent=5 // pred_check
        _
      $region10: #{tpu_custom_call.1} parent=5 // pred_check_branch
        %135 = sbr.rel (%p132) target = $region12
      $region11: #{tpu_custom_call.1} parent=5 // pred_region
        %s136 = ssub.s32 %s18, 1
      $region12: #{tpu_custom_call.1} parent=5 // pred_fallthru
        _
      %p137 = scmp.lt.s32.totalorder %s18, 3
      // Predicated region
      $region13: #{tpu_custom_call.1} parent=5 // pred_check
        %p138 = pneg %p137
      $region14: #{tpu_custom_call.1} parent=5 // pred_check_branch
        %140 = sbr.rel (%p138) target = $region16
      $region15: #{tpu_custom_call.1} parent=5 // pred_region
        // Predicated region
        $region17: #{tpu_custom_call.1} parent=15 // pred_check
          %p141 = pneg %p38
        $region18: #{tpu_custom_call.1} parent=15 // pred_check_branch
          %143 = sbr.rel (%p141) target = $region20
        $region19: #{tpu_custom_call.1} parent=15 // pred_region
          %s144 = sand.u32 %s28, 1
          %s145 = scalar_lea.sflag [#allocation3], %s144
          %s146 = sand.u32 %s28, 1
          %s147 = smul.addr %s146, 8
          %s148 = scalar_lea.vmem [#allocation2], %s147
          %s150 = ssub.s32 128, 128
          %151 = vsyncadd %s145, %s150
          %s152 = smul.addr %s18, 128
          %s153 = scalar_lea.hbm %s0, %s152
          %s155 = sshll.u32 %s148, 4
          %s156 = int_to_ptr.vmem [resolvable:$true] %s155
          %158 = dma.hbm_to_vmem [thread:$0]  %s153, 128, %s156, %s145
        $region20: #{tpu_custom_call.1} parent=15 // pred_fallthru
          _
        // Predicated region
        $region21: #{tpu_custom_call.1} parent=15 // pred_check
          %p159 = pneg %p64
        $region22: #{tpu_custom_call.1} parent=15 // pred_check_branch
          %161 = sbr.rel (%p159) target = $region24
        $region23: #{tpu_custom_call.1} parent=15 // pred_region
          %s162 = sand.u32 %s54, 1
          %s163 = scalar_lea.sflag [#allocation6], %s162
          %s164 = sand.u32 %s54, 1
          %s165 = smul.addr %s164, 8
          %s166 = scalar_lea.vmem [#allocation5], %s165
          %s168 = ssub.s32 128, 128
          %169 = vsyncadd %s163, %s168
          %s170 = smul.addr %s18, 128
          %s171 = scalar_lea.hbm %s1, %s170
          %s173 = sshll.u32 %s166, 4
          %s174 = int_to_ptr.vmem [resolvable:$true] %s173
          %176 = dma.hbm_to_vmem [thread:$0]  %s171, 128, %s174, %s163
        $region24: #{tpu_custom_call.1} parent=15 // pred_fallthru
          _
        // Predicated region
        $region25: #{tpu_custom_call.1} parent=15 // pred_check
          %p177 = pneg %p90
        $region26: #{tpu_custom_call.1} parent=15 // pred_check_branch
          %179 = sbr.rel (%p177) target = $region28
        $region27: #{tpu_custom_call.1} parent=15 // pred_region
          %p180 = scmp.lt.s32.totalorder %s18, 2
          %s181 = scalar_select %p180, %s18, 2
          %s182 = scalar_lea.vmem %s2, %s181
        $region28: #{tpu_custom_call.1} parent=15 // pred_fallthru
          _
      $region16: #{tpu_custom_call.1} parent=5 // pred_fallthru
        _
      %p183 = scmp.le.s32.totalorder 1, %s18
      %p184 = scmp.lt.s32.totalorder %s18, 4
      %p185 = pnand %p183, %p184
      %p186 = pneg %p185
      // Predicated region
      $region29: #{tpu_custom_call.1} parent=5 // pred_check
        _
      $region30: #{tpu_custom_call.1} parent=5 // pred_check_branch
        %188 = sbr.rel (%p185) target = $region32
      $region31: #{tpu_custom_call.1} parent=5 // pred_region
        %s189 = ssub.s32 %s18, 1
        %s190 = sand.u32 %s31, 1
        %s191 = scalar_lea.sflag [#allocation3], %s190
        %s192 = sand.u32 %s31, 1
        %s193 = smul.addr %s192, 8
        %s194 = scalar_lea.vmem [#allocation2], %s193
        // Predicated region
        $region33: #{tpu_custom_call.1} parent=31 // pred_check
          %p195 = pneg %p44
        $region34: #{tpu_custom_call.1} parent=31 // pred_check_branch
          %197 = sbr.rel (%p195) target = $region36
        $region35: #{tpu_custom_call.1} parent=31 // pred_region
          %198 = dma.done %s191, 128
        $region36: #{tpu_custom_call.1} parent=31 // pred_fallthru
          _
        %s199 = sand.u32 %s57, 1
        %s200 = scalar_lea.sflag [#allocation6], %s199
        %s201 = sand.u32 %s57, 1
        %s202 = smul.addr %s201, 8
        %s203 = scalar_lea.vmem [#allocation5], %s202
        // Predicated region
        $region37: #{tpu_custom_call.1} parent=31 // pred_check
          %p204 = pneg %p70
        $region38: #{tpu_custom_call.1} parent=31 // pred_check_branch
          %206 = sbr.rel (%p204) target = $region40
        $region39: #{tpu_custom_call.1} parent=31 // pred_region
          %207 = dma.done %s200, 128
        $region40: #{tpu_custom_call.1} parent=31 // pred_fallthru
          _
        %s208 = sand.u32 %s31, 1
        %s209 = scalar_lea.sflag [#allocation3], %s208
        %s210 = sand.u32 %s31, 1
        %s211 = smul.addr %s210, 8
        %s212 = scalar_lea.vmem [#allocation2], %s211
        %p213 = pneg %p44
        %p214 = pneg %p41
        %s215 = sand.u32 %s57, 1
        %s216 = scalar_lea.sflag [#allocation6], %s215
        %s217 = sand.u32 %s57, 1
        %s218 = smul.addr %s217, 8
        %s219 = scalar_lea.vmem [#allocation5], %s218
        %p220 = pneg %p70
        %p221 = pneg %p67
        %p222 = scmp.lt.s32.totalorder %s23, 2
        %s223 = scalar_select %p222, %s23, 2
        %s224 = scalar_lea.vmem %s2, %s223
        %p225 = pneg %p96
        %p226 = pneg %p93
        %p227 = pneg %p122
        %p228 = pneg %p119
        %s229 = sand.u32 %s109, 1
        %s230 = scalar_lea.sflag [#allocation4], %s229
        %s231 = sand.u32 %s109, 1
        %s232 = scalar_lea.vmem [#allocation7], %s231
        %p233 = scmp.lt.s32.totalorder %s23, 2
        %s234 = scalar_select %p233, %s23, 2
        %s235 = scalar_lea.vmem %s2, %s234
        %v236 = vld [vmem:[%s194] sm:$0xff]
        %v237 = vld [vmem:[%s203] sm:$0xff]
        %v238 = vld [vmem:[%s235] sm:$0x1]
        %v239 = vrot.slane %v236, 4
        %v240 = vmax.f32 %v236, %v239
        %v241 = vrot.slane %v240, 2
        %v242 = vmax.f32 %v240, %v241
        %v243 = vrot.slane %v242, 1
        %v244 = vmax.f32 %v242, %v243
        %v245 = vsub.f32 %v236, %v244
        %v246 = vmul.f32 %v245, 1.442695
        %v247 = vpow.pop %v246
        %v248 = vrot.slane %v247, 4
        %v249 = vadd.f32 %v247, %v248
        %v250 = vrot.slane %v249, 2
        %v251 = vadd.f32 %v249, %v250
        %v252 = vrot.slane %v251, 1
        %v253 = vadd.f32 %v251, %v252
        %v254 = vlog2.pop %v253
        %v255 = vmul.f32 %v254, 0.6931472
        %v256 = vadd.f32 %v255, %v244
        %v257 = vmul.f32 %v236, 0.1
        %v258 = vmul.f32 %v237, 0.1
        %v259 = vmul.f32 %v244, 0.1
        %v260 = vrot.slane %v258, 4
        %v261 = vmax.f32 %v258, %v260
        %v262 = vrot.slane %v261, 2
        %v263 = vmax.f32 %v261, %v262
        %v264 = vrot.slane %v263, 1
        %v265 = vmax.f32 %v263, %v264
        %v266 = vsub.f32 %v257, %v259
        %v267 = vmul.f32 %v266, 1.442695
        %v268 = vpow.pop %v267
        %v269 = vrot.slane %v268, 4
        %v270 = vadd.f32 %v268, %v269
        %v271 = vrot.slane %v270, 2
        %v272 = vadd.f32 %v270, %v271
        %v273 = vrot.slane %v272, 1
        %v274 = vadd.f32 %v272, %v273
        %v275 = vsub.f32 %v258, %v265
        %v276 = vmul.f32 %v275, 1.442695
        %v277 = vpow.pop %v276
        %v278 = vrot.slane %v277, 4
        %v279 = vadd.f32 %v277, %v278
        %v280 = vrot.slane %v279, 2
        %v281 = vadd.f32 %v279, %v280
        %v282 = vrot.slane %v281, 1
        %v283 = vadd.f32 %v281, %v282
        %v284 = vsub.f32 %v258, %v257
        %v285 = vsub.f32 %v259, %v265
        %v286 = vadd.f32 %v284, %v285
        %v287 = vmul.f32 %v277, %v286
        %v288 = vrot.slane %v287, 4
        %v289 = vadd.f32 %v287, %v288
        %v290 = vrot.slane %v289, 2
        %v291 = vadd.f32 %v289, %v290
        %v292 = vrot.slane %v291, 1
        %v293 = vadd.f32 %v291, %v292
        %v294 = vrcp.pop %v283
        %v295 = vmul.f32 %v283, %v294
        %v296 = vsub.f32 2.0, %v295
        %v297 = vmul.f32 %v294, %v296
        %v298 = vmul.f32 %v293, %v297
        %v299 = vmul.f32 %v274, %v297
        %v300 = vlog2.pop %v299
        %v301 = vmul.f32 %v300, 0.6931472
        %v302 = vadd.f32 %v298, %v301
        %v303 = vlaneseq
        %v304 = vshrl.u32 %v303, 7
        %v305 = vlaneseq
        %v306 = vshrl.u32 %v305, 7
        %v307 = vsub.s32 0, %v306
        %v308 = vrot.slane %v238, %v307
        %vm309 = vcmp.eq.s32.totalorder %v304, %v308
        %v310 = vsel %vm309, %v236, 0.0
        %v311 = vrot.slane %v310, 4
        %v312 = vadd.f32 %v310, %v311
        %v313 = vrot.slane %v312, 2
        %v314 = vadd.f32 %v312, %v313
        %v315 = vrot.slane %v314, 1
        %v316 = vadd.f32 %v314, %v315
        %v317 = vsub.f32 %v256, %v316
        %v318 = vmul.f32 %v302, 10.0
        %vm319 = vcmp.ne.s32.totalorder %v238, 6
        %v320 = vsel %vm319, %v317, 0.0
        %v321 = vmul.f32 %v320, 0.9
        %v322 = vadd.f32 %v318, %v321
        %s323 = smul.u32 %s23, 128
        %v324 = vlaneseq
        %v325 = vand.u32 %v324, 127
        %v326 = vstv %s323
        %v327 = vadd.s32 %v326, %v325
        %vm328 = vcmp.lt.s32.totalorder %v327, 300
        %v329 = vsel %vm328, %v322, 0.0
        %330 = vst [vmem:[%s232] sm:$0x1] %v329
        %s331 = sand.u32 %s109, 1
        %s332 = scalar_lea.sflag [#allocation4], %s331
        %s333 = sand.u32 %s109, 1
        %s334 = scalar_lea.vmem [#allocation7], %s333
        // Predicated region
        $region41: #{tpu_custom_call.1} parent=31 // pred_check
          %p335 = pneg %p119
        $region42: #{tpu_custom_call.1} parent=31 // pred_check_branch
          %337 = sbr.rel (%p335) target = $region44
        $region43: #{tpu_custom_call.1} parent=31 // pred_region
          %s339 = ssub.s32 16, 16
          %340 = vsyncadd %s332, %s339
          %s341 = smul.addr %s23, 16
          %s342 = scalar_lea.hbm %s3, %s341
          %s344 = sshll.u32 %s334, 4
          %s345 = int_to_ptr.vmem [resolvable:$true] %s344
          %347 = dma.vmem_to_hbm [thread:$0]  %s345, 16, %s342, %s332
        $region44: #{tpu_custom_call.1} parent=31 // pred_fallthru
          _
      $region32: #{tpu_custom_call.1} parent=5 // pred_fallthru
        _
      %p348 = scmp.le.s32.totalorder 2, %s18
      // Predicated region
      $region45: #{tpu_custom_call.1} parent=5 // pred_check
        %p349 = pneg %p348
      $region46: #{tpu_custom_call.1} parent=5 // pred_check_branch
        %351 = sbr.rel (%p349) target = $region48
      $region47: #{tpu_custom_call.1} parent=5 // pred_region
        %s352 = ssub.s32 %s18, 2
        // Predicated region
        $region49: #{tpu_custom_call.1} parent=47 // pred_check
          %p353 = pneg %p125
        $region50: #{tpu_custom_call.1} parent=47 // pred_check_branch
          %355 = sbr.rel (%p353) target = $region52
        $region51: #{tpu_custom_call.1} parent=47 // pred_region
          %s356 = sand.u32 %s110, 1
          %s357 = scalar_lea.sflag [#allocation4], %s356
          %s358 = sand.u32 %s110, 1
          %s359 = scalar_lea.vmem [#allocation7], %s358
          %360 = dma.done %s357, 16
        $region52: #{tpu_custom_call.1} parent=47 // pred_fallthru
          _
      $region48: #{tpu_custom_call.1} parent=5 // pred_fallthru
        _
    $region6: #{tpu_custom_call.1} parent=1 // loop_footer
      %s22 = sadd.s32 1, %s18
    $region7: #{tpu_custom_call.1} parent=1 // loop_footer_branch
      %17 = sbr.rel target = $region3
    $region8: #{tpu_custom_call.1} parent=1 // loop_exit
      _
    %361 = vsyncpa [#allocation3], 1
    %s362 = scalar_lea.sflag [#allocation3], 1
    %363 = vsyncpa %s362, 1
    %364 = vsyncpa [#allocation6], 1
    %s365 = scalar_lea.sflag [#allocation6], 1
    %366 = vsyncpa %s365, 1
    %367 = vsyncpa [#allocation4], 1
    %s368 = scalar_lea.sflag [#allocation4], 1
    %369 = vsyncpa %s368, 1

</llo_original>
